<compile_context>
chip_gen: v7x
topology: tpu7x:2x2x1
jax: 0.10.0
libtpu: 0.0.40
codegen_flags: <defaults>
</compile_context>

<pallas_src>
import functools
import math

import jax
import jax.numpy as jnp
import numpy as np
from jax.experimental import pallas as pl
from jax.experimental.pallas import tpu as pltpu


# ---------------------------------------------------------------------------
# Kernel: zero a statically-known rectangle inside one (nc_block, rb, W) tile.
# ---------------------------------------------------------------------------
def _erase_kernel(x_ref, o_ref, *, top, left, h, w, rb, row_block_start):
    nc_b, rb_, W = x_ref.shape
    # Global row index of the first row of this block (scalar int32).
    row0 = (row_block_start + pl.program_id(1)) * rb
    row = jax.lax.broadcasted_iota(jnp.int32, (nc_b, rb_, W), 1) + row0
    col = jax.lax.broadcasted_iota(jnp.int32, (nc_b, rb_, W), 2)
    erase = (row >= top) & (row < top + h) & (col >= left) & (col < left + w)
    x = x_ref[...]
    o_ref[...] = jnp.where(erase, jnp.zeros_like(x), x)


# ---------------------------------------------------------------------------
# Pallas wrapper for the non-empty-rectangle case.
# ---------------------------------------------------------------------------
def _erase_pallas(x, top, left, h, w):
    """Zero x[..., top:top+h, left:left+w] for every (n, c) plane."""
    N, C, H, W = x.shape
    NC = N * C
    itemsize = x.dtype.itemsize
    target_block_bytes = 2 * 1024 * 1024  # per buffer; 4 buffers live (in/out, x2)

    # Row-block size: multiple of 8 (sublane) dividing H, a few MiB at most;
    # ragged H falls back to the full-dim exemption of the (8, 128) rule.
    if H % 8 == 0:
        cands = [d for d in range(8, H + 1, 8) if H % d == 0]
        fits = [d for d in cands if d * W * itemsize <= target_block_bytes]
        rb = max(fits) if fits else min(cands)
    else:
        rb = H
    row_block_start = top // rb
    n_row_blocks = -(-(top + h) // rb) - row_block_start  # ceil(top+h, rb) - start

    # N*C block: largest divisor of N*C fitting the VMEM budget; keep >= 2 grid
    # blocks when possible so v7x's two TensorCores both get work.
    block_bytes = rb * W * itemsize
    divs = [d for d in range(1, NC + 1) if NC % d == 0]
    fits = [d for d in divs if d * block_bytes <= target_block_bytes]
    nc_block = max(fits) if fits else 1
    if NC > 1 and nc_block == NC and n_row_blocks == 1:
        nc_block = max(d for d in divs if d < NC)

    x3 = x.reshape(NC, H, W)
    spec = pl.BlockSpec((nc_block, rb, W),
                        lambda i, j: (i, row_block_start + j, 0))
    kernel = functools.partial(_erase_kernel, top=top, left=left, h=h, w=w,
                               rb=rb, row_block_start=row_block_start)
    out = pl.pallas_call(
        kernel,
        out_shape=jax.ShapeDtypeStruct(x3.shape, x3.dtype),
        grid_spec=pl.GridSpec(grid=(NC // nc_block, n_row_blocks),
                              in_specs=[spec], out_specs=spec),
        input_output_aliases={0: 0},  # untouched row-blocks keep input values
        compiler_params=pltpu.CompilerParams(
            dimension_semantics=("parallel", "parallel")),
    )(x3)
    return out.reshape(N, C, H, W)


# ---------------------------------------------------------------------------
# Host-side parameter sampling (torchvision RandomErasing.get_params, value=0).
# ---------------------------------------------------------------------------
def _sample_erase_params(img_hw, scale, seed, ratio=(0.3, 3.3)):
    """Stays in plain numpy on purpose: the parameters must be Python ints so
    the kernel can specialize on them (nothing here is ever traced/jitted)."""
    # TODO(synk): torchvision draws from torch's global RNG; a per-call numpy
    # Generator seeded by `seed` stands in for that state here.
    H, W = img_hw
    area = float(H * W)
    log_ratio = (math.log(ratio[0]), math.log(ratio[1]))
    rng = np.random.default_rng(seed)
    for _ in range(10):  # torchvision retries up to 10 times
        erase_area = area * float(rng.uniform(scale[0], scale[1]))
        aspect = float(np.exp(rng.uniform(log_ratio[0], log_ratio[1])))
        h = int(round(math.sqrt(erase_area * aspect)))
        w = int(round(math.sqrt(erase_area / aspect)))
        if not (h < H and w < W):
            continue
        top = int(rng.integers(0, H - h + 1))
        left = int(rng.integers(0, W - w + 1))
        return top, left, h, w
    # After 10 failed attempts torchvision returns the image untouched.
    return 0, 0, 0, 0


def pseudo_dropout(x, remove=(0.0, 0.0), seed=0):
    """Forward pass of PseudoDropout. x: float[N, C, H, W] (NCHW).

    When the sampled rectangle is non-empty the Pallas call aliases its input
    to its output; pass a copy if the original buffer must stay live after a
    donated/jitted call.
    """
    _, _, H, W = x.shape
    top, left, h, w = _sample_erase_params((H, W), remove, seed)
    if h == 0 or w == 0:
        # Empty erase region (the remove=(0,0) default, or torchvision's
        # 10-retry fallback): identity -- skip the kernel, zero HBM traffic.
        return x
    return _erase_pallas(x, top, left, h, w)


if __name__ == "__main__":
    key = jax.random.PRNGKey(0)
    N, C, H, W = 2, 4, 16, 16
    x = jax.random.normal(key, (N, C, H, W), dtype=jnp.float32)
    x_np = np.array(x)

    # 1) Module default remove=(0,0): zero-area rectangle -> identity fast path.
    out_id = jax.block_until_ready(pseudo_dropout(x, remove=(0.0, 0.0), seed=1))
    np.testing.assert_array_equal(np.array(out_id), x_np)

    # 2) Fixed non-empty rectangle -> exercises the Pallas kernel directly.
    top, left, h, w = 3, 5, 6, 7
    out_rect = jax.block_until_ready(_erase_pallas(jnp.copy(x), top, left, h, w))
    ref = x_np.copy()
    ref[..., top:top + h, left:left + w] = 0.0
    np.testing.assert_array_equal(np.array(out_rect), ref)

    # 3) Sampled rectangle from a nonzero `remove` range (same host-side
    #    RandomErasing sampling as torchvision).
    remove = (0.1, 0.3)
    t2, l2, h2, w2 = _sample_erase_params((H, W), remove, seed=123)
    out_s = jax.block_until_ready(pseudo_dropout(jnp.copy(x), remove=remove, seed=123))
    ref2 = x_np.copy()
    ref2[..., t2:t2 + h2, l2:l2 + w2] = 0.0
    np.testing.assert_array_equal(np.array(out_s), ref2)

    print("KERNEL_OK")
</pallas_src>

<mosaic_0001>
module attributes {stable_mosaic.version = 11 : i64} {
  func.func @_erase_kernel(%arg0: i32, %arg1: i32, %arg2: memref<4x16x16xf32, #tpu.memory_space<vmem>>, %arg3: memref<4x16x16xf32, #tpu.memory_space<vmem>>) attributes {dimension_semantics = [#tpu.dimension_semantics<parallel>, #tpu.dimension_semantics<parallel>], iteration_bounds = array<i64: 2, 1>, scalar_prefetch = 0 : i64, scratch_operands = 0 : i64, tpu.core_type = #tpu.core_type<tc>, window_params = [{transform_indices = @transform_0, window_bounds = array<i64: 4, 16, 16>}, {transform_indices = @transform_1, window_bounds = array<i64: 4, 16, 16>}]} {
    %c0_i32 = arith.constant 0 : i32
    %0 = arith.addi %c0_i32, %arg1 : i32
    %c16_i32 = arith.constant 16 : i32
    %1 = arith.muli %0, %c16_i32 : i32
    %2 = tpu.iota {dimensions = array<i32: 1>} : vector<4x16x16xi32>
    %3 = vector.broadcast %1 : i32 to vector<4x16x16xi32>
    %4 = arith.addi %2, %3 : vector<4x16x16xi32>
    %5 = tpu.iota {dimensions = array<i32: 2>} : vector<4x16x16xi32>
    %c3_i32 = arith.constant 3 : i32
    %6 = vector.broadcast %c3_i32 : i32 to vector<4x16x16xi32>
    %7 = arith.cmpi sge, %4, %6 : vector<4x16x16xi32>
    %c9_i32 = arith.constant 9 : i32
    %8 = vector.broadcast %c9_i32 : i32 to vector<4x16x16xi32>
    %9 = arith.cmpi slt, %4, %8 : vector<4x16x16xi32>
    %10 = arith.andi %7, %9 : vector<4x16x16xi1>
    %c5_i32 = arith.constant 5 : i32
    %11 = vector.broadcast %c5_i32 : i32 to vector<4x16x16xi32>
    %12 = arith.cmpi sge, %5, %11 : vector<4x16x16xi32>
    %13 = arith.andi %10, %12 : vector<4x16x16xi1>
    %c12_i32 = arith.constant 12 : i32
    %14 = vector.broadcast %c12_i32 : i32 to vector<4x16x16xi32>
    %15 = arith.cmpi slt, %5, %14 : vector<4x16x16xi32>
    %16 = arith.andi %13, %15 : vector<4x16x16xi1>
    %c0 = arith.constant 0 : index
    %c0_0 = arith.constant 0 : index
    %c0_1 = arith.constant 0 : index
    %17 = vector.load %arg2[%c0, %c0_0, %c0_1] : memref<4x16x16xf32, #tpu.memory_space<vmem>>, vector<4x16x16xf32>
    %cst = arith.constant 0.000000e+00 : f32
    %18 = vector.broadcast %cst : f32 to vector<4x16x16xf32>
    %19 = arith.select %16, %18, %17 : vector<4x16x16xi1>, vector<4x16x16xf32>
    %c0_2 = arith.constant 0 : index
    %c0_3 = arith.constant 0 : index
    %c0_4 = arith.constant 0 : index
    %20 = vector.load %arg3[%c0_2, %c0_3, %c0_4] : memref<4x16x16xf32, #tpu.memory_space<vmem>>, vector<4x16x16xf32>
    tpu.vector_store %arg3[%c0_2, %c0_3, %c0_4], %19 {strides = array<i32>} : memref<4x16x16xf32, #tpu.memory_space<vmem>>, vector<4x16x16xf32>,
    return
  }
  func.func @transform_0(%arg0: i32, %arg1: i32) -> (i32, i32, i32) {
    %c0_i32 = arith.constant 0 : i32
    %0 = arith.addi %c0_i32, %arg1 : i32
    %c0_i32_0 = arith.constant 0 : i32
    %c0_i32_1 = arith.constant 0 : i32
    return %arg0, %0, %c0_i32_0 : i32, i32, i32
  }
  func.func @transform_1(%arg0: i32, %arg1: i32) -> (i32, i32, i32) {
    %c0_i32 = arith.constant 0 : i32
    %0 = arith.addi %c0_i32, %arg1 : i32
    %c0_i32_0 = arith.constant 0 : i32
    %c0_i32_1 = arith.constant 0 : i32
    return %arg0, %0, %c0_i32_0 : i32, i32, i32
  }
}

</mosaic_0001>

<llo_original>
// kernel: tpu_custom_call.1
$region0: #{tpu_custom_call.1}
  #allocation0 [shape = 'u32[]', space=smem, size = 0x4, offset = 0x4, fixed_abs, tag = 'smem constant byte address 0x4 - core index']
  #allocation1 [shape = 'u32[144,128]{1,0:T(1,128)}', space=vmem, size = 0x12000, scoped, tag = 'internal scratch']
  %s0 = inlined_call_operand.hbm [shape: f32[8,16,16], index: 0, kind: input, shape index: {}, may-alias: {0,1}]
  %s1 = inlined_call_operand.hbm [shape: f32[8,16,16], index: 1, kind: output, shape index: {}, may-alias: {0,1}]
  %s2 = sld [smem:[#allocation0]]
  $region41: #{tpu_custom_call.1} parent=0
    _
  %s4 = ssub.s32 1, %s2
  %s5 = scalar_select 0, %s4, %s2
  $region1: #{tpu_custom_call.1} parent=0
    #allocation2 [shape = 'u8[65536]{0}', space=vmem, size = 0x10000, scoped, tag = 'input window, operand 0']
    #allocation3 [shape = 's32[2]{0}', space=sflag, size = 0x8, scoped, tag = 'scoped memory for tpu_custom_call.1']
    #allocation4 [shape = 's32[2]{0}', space=sflag, size = 0x8, scoped, tag = 'scoped memory for tpu_custom_call.1']
    #allocation5 [shape = 'u8[65536]{0}', space=vmem, size = 0x10000, scoped, tag = 'output window, operand 0']
    %6 = vsyncpa [#allocation3], 0
    %s7 = scalar_lea.sflag [#allocation3], 1
    %8 = vsyncpa %s7, 0
    %9 = vsyncpa [#allocation4], 0
    %s10 = scalar_lea.sflag [#allocation4], 1
    %11 = vsyncpa %s10, 0
    loop: start=0, step=1, limit=4
    $region2: #{tpu_custom_call.1} parent=1 // loop_pre_header
      _
    $region3: #{tpu_custom_call.1} parent=1 // loop_header
      %s13 = sphi 0, %s17
      %p14 = scmp.ge.s32.totalorder %s13, 4
      %s20 = sphi 0, %s32
      %s21 = sphi 0, %s28
      %s22 = sphi 0, %s20
      %s23 = sphi 0, %s21
      %s24 = sphi 0, %s22
      %s25 = sphi 0, %s23
      %s37 = sphi 0, %s39
      %s40 = sphi 0, %s37
      %s41 = sphi 0, %s40
      %s57 = sphi 0, %s41
      %s65 = sphi 0, %s67
      %s68 = sphi 0, %s65
      %s69 = sphi 0, %s68
      %s85 = sphi 0, %s69
    $region4: #{tpu_custom_call.1} parent=1 // loop_header_branch
      %16 = sbr.rel (%p14) target = $region8
    $region5: #{tpu_custom_call.1} parent=1 // loop_body
      %s18 = ssub.s32 %s13, 1
      %s19 = ssub.s32 %s13, 2
      %s26 = sadd.s32 1, %s21
      %p27 = scmp.ge.s32.totalorder %s26, 1
      %s28 = scalar_select %p27, 0, %s26
      %s29 = sadd.s32 1, %s20
      %s30 = scalar_select %p27, %s29, %s20
      %p31 = scmp.ge.s32.totalorder %s30, 2
      %s32 = scalar_select %p31, 0, %s30
      %s33 = ssub.s32 %s20, %s32
      %s34 = ssub.s32 %s21, %s28
      %s35 = sor.u32 %s33, %s34
      %p36 = scmp.eq.s32.totalorder %s35, 0
      %s38 = sadd.s32 %s37, 1
      %s39 = scalar_select %p36, %s37, %s38
      %p42 = pneg %p36
      %p43 = scmp.eq.s32.totalorder %s13, 1
      %p44 = por %p42, %p43
      %p45 = scmp.ne.s32.totalorder %s37, %s40
      %p46 = scmp.eq.s32.totalorder %s13, 0
      %p47 = por %p45, %p46
      %p48 = scmp.ne.s32.totalorder %s37, %s40
      %p49 = scmp.eq.s32.totalorder %s18, 1
      %p50 = por %p48, %p49
      %p51 = scmp.ne.s32.totalorder %s40, %s41
      %p52 = scmp.eq.s32.totalorder %s18, 0
      %p53 = por %p51, %p52
      %p54 = scmp.ne.s32.totalorder %s40, %s41
      %p55 = scmp.eq.s32.totalorder %s19, 1
      %p56 = por %p54, %p55
      %p58 = scmp.ne.s32.totalorder %s41, %s57
      %p59 = scmp.eq.s32.totalorder %s19, 0
      %p60 = por %p58, %p59
      %s61 = ssub.s32 %s20, %s32
      %s62 = ssub.s32 %s21, %s28
      %s63 = sor.u32 %s61, %s62
      %p64 = scmp.eq.s32.totalorder %s63, 0
      %s66 = sadd.s32 %s65, 1
      %s67 = scalar_select %p64, %s65, %s66
      %p70 = pneg %p64
      %p71 = scmp.eq.s32.totalorder %s13, 1
      %p72 = por %p70, %p71
      %p73 = scmp.ne.s32.totalorder %s65, %s68
      %p74 = scmp.eq.s32.totalorder %s13, 0
      %p75 = por %p73, %p74
      %p76 = scmp.ne.s32.totalorder %s65, %s68
      %p77 = scmp.eq.s32.totalorder %s18, 1
      %p78 = por %p76, %p77
      %p79 = scmp.ne.s32.totalorder %s68, %s69
      %p80 = scmp.eq.s32.totalorder %s18, 0
      %p81 = por %p79, %p80
      %p82 = scmp.ne.s32.totalorder %s68, %s69
      %p83 = scmp.eq.s32.totalorder %s19, 1
      %p84 = por %p82, %p83
      %p86 = scmp.ne.s32.totalorder %s69, %s85
      %p87 = scmp.eq.s32.totalorder %s19, 0
      %p88 = por %p86, %p87
      %p89 = scmp.le.s32.totalorder 1, %s13
      %p90 = scmp.lt.s32.totalorder %s13, 3
      %p91 = pnand %p89, %p90
      %p92 = pneg %p91
      // Predicated region
      $region9: #{tpu_custom_call.1} parent=5 // pred_check
        _
      $region10: #{tpu_custom_call.1} parent=5 // pred_check_branch
        %94 = sbr.rel (%p91) target = $region12
      $region11: #{tpu_custom_call.1} parent=5 // pred_region
        %s95 = ssub.s32 %s13, 1
      $region12: #{tpu_custom_call.1} parent=5 // pred_fallthru
        _
      %p96 = scmp.lt.s32.totalorder %s13, 2
      // Predicated region
      $region13: #{tpu_custom_call.1} parent=5 // pred_check
        %p97 = pneg %p96
      $region14: #{tpu_custom_call.1} parent=5 // pred_check_branch
        %99 = sbr.rel (%p97) target = $region16
      $region15: #{tpu_custom_call.1} parent=5 // pred_region
        // Predicated region
        $region17: #{tpu_custom_call.1} parent=15 // pred_check
          %p100 = pneg %p47
        $region18: #{tpu_custom_call.1} parent=15 // pred_check_branch
          %102 = sbr.rel (%p100) target = $region20
        $region19: #{tpu_custom_call.1} parent=15 // pred_region
          %s103 = sand.u32 %s37, 1
          %s104 = scalar_lea.sflag [#allocation3], %s103
          %s105 = sand.u32 %s37, 1
          %s106 = smul.addr %s105, 64
          %s107 = scalar_lea.vmem [#allocation2], %s106
          %s108 = smul.u32 4, %s20
          %s109 = smul.u32 2, %s21
          %s111 = ssub.s32 1024, 1024
          %112 = vsyncadd %s104, %s111
          %s113 = smul.addr %s108, 2
          %s114 = sadd.s32 %s109, %s113
          %s115 = smul.addr %s114, 128
          %s116 = scalar_lea.hbm %s0, %s115
          %s117 = sshll.u32 %s107, 4
          %s118 = int_to_ptr.vmem [resolvable:$true] %s117
          %123 = dma.hbm_to_vmem [thread:$0]  %s116, 1024, %s118, %s104, 128, 128, 8
        $region20: #{tpu_custom_call.1} parent=15 // pred_fallthru
          _
      $region16: #{tpu_custom_call.1} parent=5 // pred_fallthru
        _
      %p124 = scmp.le.s32.totalorder 1, %s13
      %p125 = scmp.lt.s32.totalorder %s13, 3
      %p126 = pnand %p124, %p125
      %p127 = pneg %p126
      // Predicated region
      $region21: #{tpu_custom_call.1} parent=5 // pred_check
        _
      $region22: #{tpu_custom_call.1} parent=5 // pred_check_branch
        %129 = sbr.rel (%p126) target = $region24
      $region23: #{tpu_custom_call.1} parent=5 // pred_region
        %s130 = ssub.s32 %s13, 1
        %s131 = sand.u32 %s40, 1
        %s132 = scalar_lea.sflag [#allocation3], %s131
        %s133 = sand.u32 %s40, 1
        %s134 = smul.addr %s133, 64
        %s135 = scalar_lea.vmem [#allocation2], %s134
        // Predicated region
        $region25: #{tpu_custom_call.1} parent=23 // pred_check
          %p136 = pneg %p53
        $region26: #{tpu_custom_call.1} parent=23 // pred_check_branch
          %138 = sbr.rel (%p136) target = $region28
        $region27: #{tpu_custom_call.1} parent=23 // pred_region
          %139 = dma.done %s132, 1024
        $region28: #{tpu_custom_call.1} parent=23 // pred_fallthru
          _
        %s140 = sand.u32 %s40, 1
        %s141 = scalar_lea.sflag [#allocation3], %s140
        %s142 = sand.u32 %s40, 1
        %s143 = smul.addr %s142, 64
        %s144 = scalar_lea.vmem [#allocation2], %s143
        %p145 = pneg %p53
        %p146 = pneg %p50
        %p147 = pneg %p81
        %p148 = pneg %p78
        %s149 = sand.u32 %s68, 1
        %s150 = scalar_lea.sflag [#allocation4], %s149
        %s151 = sand.u32 %s68, 1
        %s152 = smul.addr %s151, 64
        %s153 = scalar_lea.vmem [#allocation5], %s152
        %s154 = smul.u32 4, %s22
        %s155 = smul.u32 2, %s23
        %s156 = smul.u32 4, %s22
        %s157 = smul.u32 2, %s23
        %s158 = smul.u32 %s23, 16
        %v159 = vlaneseq
        %v160 = vshrl.u32 %v159, 7
        %v161 = vadd.s32 %v160, 8
        %v162 = vstv %s158
        %v163 = vadd.s32 %v160, %v162
        %v164 = vadd.s32 %v161, %v162
        %v165 = vlaneseq
        %v166 = vand.u32 %v165, 127
        %vm167 = vcmp.ge.s32.totalorder %v163, 3
        %vm168 = vcmp.ge.s32.totalorder %v164, 3
        %vm169 = vcmp.lt.s32.totalorder %v163, 9
        %vm170 = vcmp.lt.s32.totalorder %v164, 9
        %vm171 = vmand %vm167, %vm169
        %vm172 = vmand %vm168, %vm170
        %vm173 = vcmp.ge.s32.totalorder %v166, 5
        %vm174 = vmand %vm171, %vm173
        %vm175 = vmand %vm172, %vm173
        %vm176 = vcmp.lt.s32.totalorder %v166, 12
        %vm177 = vmand %vm174, %vm176
        %vm178 = vmand %vm175, %vm176
        %v179 = vld [vmem:[%s135] sm:$0xff]
        %v180 = vld [vmem:[%s135 + $0x8] sm:$0xff]
        %v181 = vld [vmem:[%s135 + $0x10] sm:$0xff]
        %v182 = vld [vmem:[%s135 + $0x18] sm:$0xff]
        %v183 = vld [vmem:[%s135 + $0x20] sm:$0xff]
        %v184 = vld [vmem:[%s135 + $0x28] sm:$0xff]
        %v185 = vld [vmem:[%s135 + $0x30] sm:$0xff]
        %v186 = vld [vmem:[%s135 + $0x38] sm:$0xff]
        %v187 = vsel %vm177, 0.0, %v179
        %v188 = vsel %vm178, 0.0, %v180
        %v189 = vsel %vm177, 0.0, %v181
        %v190 = vsel %vm178, 0.0, %v182
        %v191 = vsel %vm177, 0.0, %v183
        %v192 = vsel %vm178, 0.0, %v184
        %v193 = vsel %vm177, 0.0, %v185
        %v194 = vsel %vm178, 0.0, %v186
        %vm195 = vcmask 130048
        %196 = vst.msk [vmem:[%s153] sm:$0xff] %vm195, %v187
        %197 = vst.msk [vmem:[%s153 + $0x8] sm:$0xff] %vm195, %v188
        %198 = vst.msk [vmem:[%s153 + $0x10] sm:$0xff] %vm195, %v189
        %199 = vst.msk [vmem:[%s153 + $0x18] sm:$0xff] %vm195, %v190
        %200 = vst.msk [vmem:[%s153 + $0x20] sm:$0xff] %vm195, %v191
        %201 = vst.msk [vmem:[%s153 + $0x28] sm:$0xff] %vm195, %v192
        %202 = vst.msk [vmem:[%s153 + $0x30] sm:$0xff] %vm195, %v193
        %203 = vst.msk [vmem:[%s153 + $0x38] sm:$0xff] %vm195, %v194
        %s204 = sand.u32 %s68, 1
        %s205 = scalar_lea.sflag [#allocation4], %s204
        %s206 = sand.u32 %s68, 1
        %s207 = smul.addr %s206, 64
        %s208 = scalar_lea.vmem [#allocation5], %s207
        // Predicated region
        $region29: #{tpu_custom_call.1} parent=23 // pred_check
          %p209 = pneg %p78
        $region30: #{tpu_custom_call.1} parent=23 // pred_check_branch
          %211 = sbr.rel (%p209) target = $region32
        $region31: #{tpu_custom_call.1} parent=23 // pred_region
          %s212 = smul.u32 4, %s22
          %s213 = smul.u32 2, %s23
          %s215 = ssub.s32 1024, 1024
          %216 = vsyncadd %s205, %s215
          %s217 = smul.addr %s212, 2
          %s218 = sadd.s32 %s213, %s217
          %s219 = smul.addr %s218, 128
          %s220 = scalar_lea.hbm %s1, %s219
          %s221 = sshll.u32 %s208, 4
          %s222 = int_to_ptr.vmem [resolvable:$true] %s221
          %227 = dma.vmem_to_hbm [thread:$0]  %s222, 1024, %s220, %s205, 128, 128, 8
        $region32: #{tpu_custom_call.1} parent=23 // pred_fallthru
          _
      $region24: #{tpu_custom_call.1} parent=5 // pred_fallthru
        _
      %p228 = scmp.le.s32.totalorder 2, %s13
      // Predicated region
      $region33: #{tpu_custom_call.1} parent=5 // pred_check
        %p229 = pneg %p228
      $region34: #{tpu_custom_call.1} parent=5 // pred_check_branch
        %231 = sbr.rel (%p229) target = $region36
      $region35: #{tpu_custom_call.1} parent=5 // pred_region
        %s232 = ssub.s32 %s13, 2
        // Predicated region
        $region37: #{tpu_custom_call.1} parent=35 // pred_check
          %p233 = pneg %p84
        $region38: #{tpu_custom_call.1} parent=35 // pred_check_branch
          %235 = sbr.rel (%p233) target = $region40
        $region39: #{tpu_custom_call.1} parent=35 // pred_region
          %s236 = sand.u32 %s69, 1
          %s237 = scalar_lea.sflag [#allocation4], %s236
          %s238 = sand.u32 %s69, 1
          %s239 = smul.addr %s238, 64
          %s240 = scalar_lea.vmem [#allocation5], %s239
          %241 = dma.done %s237, 1024
        $region40: #{tpu_custom_call.1} parent=35 // pred_fallthru
          _
      $region36: #{tpu_custom_call.1} parent=5 // pred_fallthru
        _
    $region6: #{tpu_custom_call.1} parent=1 // loop_footer
      %s17 = sadd.s32 1, %s13
    $region7: #{tpu_custom_call.1} parent=1 // loop_footer_branch
      %12 = sbr.rel target = $region3
    $region8: #{tpu_custom_call.1} parent=1 // loop_exit
      _
    %242 = vsyncpa [#allocation3], 1
    %s243 = scalar_lea.sflag [#allocation3], 1
    %244 = vsyncpa %s243, 1
    %245 = vsyncpa [#allocation4], 1
    %s246 = scalar_lea.sflag [#allocation4], 1
    %247 = vsyncpa %s246, 1

</llo_original>
